<compile_context>
chip_gen: v7x
topology: tpu7x:2x2x1
jax: 0.10.0
libtpu: 0.0.40
codegen_flags: <defaults>
</compile_context>

<pallas_src>
import functools

import jax
import jax.numpy as jnp
from jax.experimental import pallas as pl
from jax.experimental.pallas import tpu as pltpu

_LANES = 128
_SUBLANES = 8


def _kl_kernel(mu_ref, ls_ref, out_ref, acc_ref, *,
               row_tile, steps_per_split, rows, mask_start,
               num_logical_blocks, max_log_var):
    c = pl.program_id(0)      # split index ("parallel": megacore sharding)
    i = pl.program_id(1)      # step within split ("arbitrary": carries acc)
    block_idx = c * steps_per_split + i

    @pl.when(i == 0)
    def _():
        acc_ref[...] = jnp.zeros_like(acc_ref)

    def accumulate(masked):
        mu = mu_ref[...].astype(jnp.float32)
        log_var = 2.0 * ls_ref[...].astype(jnp.float32)
        if max_log_var is not None:
            log_var = jnp.clip(log_var, -max_log_var, max_log_var)
        # Per-element term; the "+1" per element is recovered analytically in
        # the wrapper epilogue (sum of 1+lv-mu^2-e^lv = acc + element count).
        term = log_var - mu * mu - jnp.exp(log_var)
        if masked:
            # Zero rows past the end of the (rows, 128) array: the ragged last
            # block's garbage tail and clamped re-read blocks contribute 0.
            # Must stay a select (jnp.where) so NaN/Inf garbage is dropped.
            row_ids = (block_idx * row_tile
                       + jax.lax.broadcasted_iota(jnp.int32, term.shape, 0))
            term = jnp.where(row_ids < rows, term, 0.0)
        # Free re-view to (row_tile//8, 8, 128): minor dims match the native
        # vreg tile; sum(axis=0) is pure cross-vreg VPU adds (no XLU).
        acc_ref[...] += term.reshape(row_tile // _SUBLANES,
                                     _SUBLANES, _LANES).sum(axis=0)

    if mask_start >= num_logical_blocks:
        # No block ever needs masking: keep the hot path branch-free.
        accumulate(masked=False)
    elif mask_start <= 0:
        accumulate(masked=True)
    else:
        @pl.when(block_idx < mask_start)
        def _():
            accumulate(masked=False)

        @pl.when(block_idx >= mask_start)
        def _():
            accumulate(masked=True)

    @pl.when(i == pl.num_programs(1) - 1)
    def _():
        # Single (8,128) vreg XLU reduce per split.
        out_ref[0, 0] = jnp.sum(acc_ref[...])


def _default_num_splits():
    # 2 splits only on 2-TensorCore chips (v7x); 1 on v5e/v6e (extra splits
    # just serialize and force clamped re-read DMAs).
    try:
        kind = jax.devices()[0].device_kind.lower().replace(" ", "")
    except Exception:
        return 1
    return 2 if ("v7" in kind or "tpu7" in kind) else 1


def unit_normal_kl_div_loss(mu, log_std, *, reduction='mean',
                            max_log_var=14.0, row_tile=8192, num_splits=None):
    """Pallas port of UnitNormalKLDivLoss.forward for reduction='mean'."""
    if reduction != 'mean':
        # TODO(synk): only the default 'mean' reduction is implemented in-kernel.
        raise NotImplementedError("kernel implements reduction='mean' only")
    if max_log_var is not None:
        assert max_log_var >= 0
    assert mu.shape == log_std.shape

    n = mu.size                      # true element count; N_rows * D == n

    # Lane-dense view: flatten and reshape to (rows, 128).  Pad only to a
    # multiple of 128 (lane alignment) — sublane raggedness is handled by the
    # in-kernel mask — except for tiny inputs which are padded to a full
    # (8, 128) tile.  Padded zeros are compensated exactly in the epilogue.
    mu_flat = mu.reshape(-1)
    ls_flat = log_std.reshape(-1)
    padded_len = pl.cdiv(n, _LANES) * _LANES
    rows = padded_len // _LANES
    if rows < _SUBLANES:
        rows = _SUBLANES
        padded_len = rows * _LANES
    pad = padded_len - n
    if pad:
        # TODO(synk): for very large inputs with n % 128 != 0 this copy could
        # be avoided by computing the <128-element tail in plain JAX.
        mu_flat = jnp.pad(mu_flat, (0, pad))
        ls_flat = jnp.pad(ls_flat, (0, pad))
    mu2 = mu_flat.reshape(rows, _LANES)
    ls2 = ls_flat.reshape(rows, _LANES)

    # Tile choice: largest tile up to `row_tile` rows; multiple of 16 sublanes
    # for 16-bit inputs (sublane packing), otherwise multiple of 8.
    sub = _SUBLANES
    if mu.dtype.itemsize == 2 and rows >= 2 * _SUBLANES:
        sub = 2 * _SUBLANES
    row_tile = int(min(row_tile, rows))
    row_tile = max(_SUBLANES, (row_tile // sub) * sub)

    if num_splits is None:
        num_splits = _default_num_splits()
    total_blocks = pl.cdiv(rows, row_tile)
    num_splits = int(max(1, min(num_splits, total_blocks)))
    steps_per_split = pl.cdiv(total_blocks, num_splits)
    num_logical_blocks = num_splits * steps_per_split
    last_block = total_blocks - 1
    ragged = (rows % row_tile) != 0
    # Blocks with logical index >= mask_start run the masked body; this covers
    # the ragged last block and every clamped re-read (duplicate) block.
    mask_start = last_block if ragged else total_blocks

    if num_logical_blocks == total_blocks:
        def in_index_map(c, i):
            return (c * steps_per_split + i, 0)
    else:
        def in_index_map(c, i):
            # Clamp so uneven-split re-read blocks stay in bounds; their
            # contribution is zeroed by the in-kernel row mask.
            return (jnp.minimum(c * steps_per_split + i, last_block), 0)

    kernel = functools.partial(
        _kl_kernel, row_tile=row_tile, steps_per_split=steps_per_split,
        rows=rows, mask_start=mask_start,
        num_logical_blocks=num_logical_blocks, max_log_var=max_log_var)

    itemsize = mu.dtype.itemsize
    cost = pl.CostEstimate(flops=6 * n, transcendentals=n,
                           bytes_accessed=2 * padded_len * itemsize
                           + 4 * num_splits)

    # TODO(synk): on v7x, verify "parallel" shards the split axis across both
    # TensorCores; if not, switch axis 0 to pltpu.CORE_PARALLEL.
    partials = pl.pallas_call(
        kernel,
        out_shape=jax.ShapeDtypeStruct((num_splits, 1), jnp.float32),
        grid_spec=pltpu.PrefetchScalarGridSpec(
            num_scalar_prefetch=0,
            grid=(num_splits, steps_per_split),
            in_specs=[
                pl.BlockSpec((row_tile, _LANES), in_index_map),
                pl.BlockSpec((row_tile, _LANES), in_index_map),
            ],
            out_specs=pl.BlockSpec((1, 1), lambda c, i: (c, 0),
                                   memory_space=pltpu.SMEM),
            scratch_shapes=[pltpu.VMEM((_SUBLANES, _LANES), jnp.float32)],
        ),
        compiler_params=pltpu.CompilerParams(
            dimension_semantics=("parallel", "arbitrary"),
            vmem_limit_bytes=48 * 1024 * 1024),
        cost_estimate=cost,
    )(mu2, ls2)

    # Epilogue: sum over all counted elements of (1 + lv - mu^2 - e^lv) equals
    # A + padded_len (each zero-pad element adds -1 to A and +1 to the count,
    # so padding cancels exactly); masked garbage rows contribute nothing.
    a = jnp.sum(partials)
    return -0.5 * (a + jnp.float32(padded_len)) / jnp.float32(n)


def _reference(mu, log_std, max_log_var=14.0):
    log_var = 2.0 * log_std
    if max_log_var is not None:
        log_var = jnp.clip(log_var, -max_log_var, max_log_var)
    kl = -0.5 * jnp.sum(1.0 + log_var - jnp.square(mu) - jnp.exp(log_var),
                        axis=-1)
    return jnp.mean(kl) / mu.shape[-1]


if __name__ == "__main__":
    key = jax.random.PRNGKey(0)
    k1, k2, k3, k4, k5, k6, k7, k8 = jax.random.split(key, 8)

    # case 1: batch=4, seq=8, hidden=32 (flat length 128-aligned, no pad, no mask)
    mu = jax.random.normal(k1, (4, 8, 32), dtype=jnp.float32)
    log_std = 0.5 * jax.random.normal(k2, (4, 8, 32), dtype=jnp.float32)
    loss = jax.block_until_ready(unit_normal_kl_div_loss(mu, log_std))
    ref = _reference(mu, log_std)
    assert jnp.allclose(loss, ref, rtol=1e-5, atol=1e-6), (loss, ref)

    # case 2: ragged flat length (3*5*40 = 600 -> small zero-pad path)
    mu_b = jax.random.normal(k3, (3, 5, 40), dtype=jnp.float32)
    ls_b = 0.5 * jax.random.normal(k4, (3, 5, 40), dtype=jnp.float32)
    loss_b = jax.block_until_ready(unit_normal_kl_div_loss(mu_b, ls_b))
    ref_b = _reference(mu_b, ls_b)
    assert jnp.allclose(loss_b, ref_b, rtol=1e-5, atol=1e-6), (loss_b, ref_b)

    # case 3: multiple blocks + uneven 2-way split (exercises clamp + masked/
    # unmasked pl.when branches)
    mu_c = jax.random.normal(k5, (2, 3, 1024), dtype=jnp.float32)
    ls_c = 0.5 * jax.random.normal(k6, (2, 3, 1024), dtype=jnp.float32)
    loss_c = jax.block_until_ready(
        unit_normal_kl_div_loss(mu_c, ls_c, row_tile=16, num_splits=2))
    ref_c = _reference(mu_c, ls_c)
    assert jnp.allclose(loss_c, ref_c, rtol=1e-5, atol=1e-6), (loss_c, ref_c)

    # case 4: ragged row count (5*7*128 -> 35 rows, tile 32, masked last block)
    mu_d = jax.random.normal(k7, (5, 7, 128), dtype=jnp.float32)
    ls_d = 0.5 * jax.random.normal(k8, (5, 7, 128), dtype=jnp.float32)
    loss_d = jax.block_until_ready(unit_normal_kl_div_loss(mu_d, ls_d))
    ref_d = _reference(mu_d, ls_d)
    assert jnp.allclose(loss_d, ref_d, rtol=1e-5, atol=1e-6), (loss_d, ref_d)

    # case 5: bf16 inputs (kernel upcasts to f32 internally)
    mu_e = mu.astype(jnp.bfloat16)
    ls_e = log_std.astype(jnp.bfloat16)
    loss_e = jax.block_until_ready(unit_normal_kl_div_loss(mu_e, ls_e))
    ref_e = _reference(mu_e.astype(jnp.float32), ls_e.astype(jnp.float32))
    assert jnp.allclose(loss_e, ref_e, rtol=1e-5, atol=1e-5), (loss_e, ref_e)

    print("KERNEL_OK")
</pallas_src>

<mosaic_0001>
module attributes {stable_mosaic.version = 11 : i64} {
  func.func @_kl_kernel(%arg0: i32, %arg1: i32, %arg2: memref<8x128xf32, #tpu.memory_space<vmem>>, %arg3: memref<8x128xf32, #tpu.memory_space<vmem>>, %arg4: memref<1x1xf32, #tpu.memory_space<smem>>, %arg5: memref<8x128xf32, #tpu.memory_space<vmem>>) attributes {dimension_semantics = [#tpu.dimension_semantics<parallel>, #tpu.dimension_semantics<arbitrary>], iteration_bounds = array<i64: 1, 1>, scalar_prefetch = 0 : i64, scratch_operands = 1 : i64, tpu.core_type = #tpu.core_type<tc>, window_params = [{transform_indices = @transform_0, window_bounds = array<i64: 8, 128>}, {transform_indices = @transform_1, window_bounds = array<i64: 8, 128>}, {transform_indices = @transform_2, window_bounds = array<i64: 1, 1>}]} {
    %c0_i32 = arith.constant 0 : i32
    %0 = arith.cmpi eq, %arg1, %c0_i32 : i32
    %1 = arith.extui %0 : i1 to i32
    %c0_i32_0 = arith.constant 0 : i32
    %2 = arith.cmpi ne, %1, %c0_i32_0 : i32
    scf.if %2 {
      %cst_13 = arith.constant 0.000000e+00 : f32
      %23 = vector.broadcast %cst_13 : f32 to vector<8x128xf32>
      %c0_14 = arith.constant 0 : index
      %c0_15 = arith.constant 0 : index
      %24 = vector.load %arg5[%c0_14, %c0_15] : memref<8x128xf32, #tpu.memory_space<vmem>>, vector<8x128xf32>
      tpu.vector_store %arg5[%c0_14, %c0_15], %23 {strides = array<i32>} : memref<8x128xf32, #tpu.memory_space<vmem>>, vector<8x128xf32>,
    } else {
    }
    %c0 = arith.constant 0 : index
    %c0_1 = arith.constant 0 : index
    %3 = vector.load %arg2[%c0, %c0_1] : memref<8x128xf32, #tpu.memory_space<vmem>>, vector<8x128xf32>
    %c0_2 = arith.constant 0 : index
    %c0_3 = arith.constant 0 : index
    %4 = vector.load %arg3[%c0_2, %c0_3] : memref<8x128xf32, #tpu.memory_space<vmem>>, vector<8x128xf32>
    %cst = arith.constant 2.000000e+00 : f32
    %5 = vector.broadcast %cst : f32 to vector<8x128xf32>
    %6 = arith.mulf %5, %4 : vector<8x128xf32>
    %cst_4 = arith.constant -1.400000e+01 : f32
    %cst_5 = arith.constant 1.400000e+01 : f32
    %7 = vector.broadcast %cst_4 : f32 to vector<8x128xf32>
    %8 = arith.maximumf %7, %6 : vector<8x128xf32>
    %9 = vector.broadcast %cst_5 : f32 to vector<8x128xf32>
    %10 = arith.minimumf %9, %8 : vector<8x128xf32>
    %11 = arith.mulf %3, %3 : vector<8x128xf32>
    %12 = arith.subf %10, %11 : vector<8x128xf32>
    %13 = math.exp %10 : vector<8x128xf32>
    %14 = arith.subf %12, %13 : vector<8x128xf32>
    %c0_6 = arith.constant 0 : index
    %c0_7 = arith.constant 0 : index
    %15 = vector.load %arg5[%c0_6, %c0_7] : memref<8x128xf32, #tpu.memory_space<vmem>>, vector<8x128xf32>
    %16 = vector.shape_cast %14 : vector<8x128xf32> to vector<1x8x128xf32>
    %cst_8 = arith.constant dense<0.000000e+00> : vector<8x128xf32>
    %17 = vector.multi_reduction <add>, %16, %cst_8 [0] : vector<1x8x128xf32> to vector<8x128xf32>
    %18 = arith.addf %15, %17 : vector<8x128xf32>
    %c0_9 = arith.constant 0 : index
    %c0_10 = arith.constant 0 : index
    %19 = vector.load %arg5[%c0_9, %c0_10] : memref<8x128xf32, #tpu.memory_space<vmem>>, vector<8x128xf32>
    tpu.vector_store %arg5[%c0_9, %c0_10], %18 {strides = array<i32>} : memref<8x128xf32, #tpu.memory_space<vmem>>, vector<8x128xf32>,
    %c0_i32_11 = arith.constant 0 : i32
    %20 = arith.cmpi eq, %arg1, %c0_i32_11 : i32
    %21 = arith.extui %20 : i1 to i32
    %c0_i32_12 = arith.constant 0 : i32
    %22 = arith.cmpi ne, %21, %c0_i32_12 : i32
    scf.if %22 {
      %c0_13 = arith.constant 0 : index
      %c0_14 = arith.constant 0 : index
      %23 = vector.load %arg5[%c0_13, %c0_14] : memref<8x128xf32, #tpu.memory_space<vmem>>, vector<8x128xf32>
      %24 = vector.shape_cast %23 : vector<8x128xf32> to vector<1x8x128xf32>
      %cst_15 = arith.constant dense<0.000000e+00> : vector<1xf32>
      %25 = vector.multi_reduction <add>, %24, %cst_15 [1, 2] : vector<1x8x128xf32> to vector<1xf32>
      %26 = vector.shape_cast %25 : vector<1xf32> to vector<1x1x1xf32>
      %27 = vector.extract %26[0, 0, 0] : f32 from vector<1x1x1xf32>
      %c0_16 = arith.constant 0 : index
      %c0_17 = arith.constant 0 : index
      %28 = memref.load %arg4[%c0_16, %c0_17] : memref<1x1xf32, #tpu.memory_space<smem>>
      memref.store %27, %arg4[%c0_16, %c0_17] : memref<1x1xf32, #tpu.memory_space<smem>>
    } else {
    }
    return
  }
  func.func @transform_0(%arg0: i32, %arg1: i32) -> (i32, i32) {
    %c1_i32 = arith.constant 1 : i32
    %0 = arith.muli %arg0, %c1_i32 : i32
    %1 = arith.addi %0, %arg1 : i32
    %c0_i32 = arith.constant 0 : i32
    %c0_i32_0 = arith.constant 0 : i32
    return %1, %c0_i32 : i32, i32
  }
  func.func @transform_1(%arg0: i32, %arg1: i32) -> (i32, i32) {
    %c1_i32 = arith.constant 1 : i32
    %0 = arith.muli %arg0, %c1_i32 : i32
    %1 = arith.addi %0, %arg1 : i32
    %c0_i32 = arith.constant 0 : i32
    %c0_i32_0 = arith.constant 0 : i32
    return %1, %c0_i32 : i32, i32
  }
  func.func @transform_2(%arg0: i32, %arg1: i32) -> (i32, i32) {
    %c0_i32 = arith.constant 0 : i32
    %c0_i32_0 = arith.constant 0 : i32
    return %arg0, %c0_i32 : i32, i32
  }
}

</mosaic_0001>

<llo_original>
// kernel: tpu_custom_call.1
$region0: #{tpu_custom_call.1}
  #allocation0 [shape = 'u32[]', space=smem, size = 0x4, offset = 0x4, fixed_abs, tag = 'smem constant byte address 0x4 - core index']
  #allocation1 [shape = 'u32[144,128]{1,0:T(1,128)}', space=vmem, size = 0x12000, scoped, tag = 'internal scratch']
  #allocation2 [shape = 'f32[8,128]{1,0:T(8,128)}', space=vmem, size = 0x1000, scoped, tag = 'scratch operand']
  %s0 = inlined_call_operand.hbm [shape: f32[8,128], index: 0, kind: input, shape index: {}]
  %s1 = inlined_call_operand.hbm [shape: f32[8,128], index: 1, kind: input, shape index: {}]
  %s2 = inlined_call_operand.hbm [shape: f32[1,1], index: 2, kind: output, shape index: {}]
  %s3 = sld [smem:[#allocation0]]
  $region34: #{tpu_custom_call.1} parent=0
    _
  %s5 = ssub.s32 1, %s3
  %s6 = scalar_select 0, %s5, %s3
  $region1: #{tpu_custom_call.1} parent=0
    #allocation3 [shape = 'u8[4096]{0}', space=vmem, size = 0x1000, scoped, tag = 'input window, operand 0, single buffered']
    #allocation4 [shape = 's32[1]{0}', space=sflag, size = 0x4, scoped, tag = 'scoped memory for tpu_custom_call.1']
    #allocation5 [shape = 's32[1]{0}', space=sflag, size = 0x4, scoped, tag = 'scoped memory for tpu_custom_call.1']
    #allocation6 [shape = 'u8[4096]{0}', space=vmem, size = 0x1000, scoped, tag = 'input window, operand 1, single buffered']
    #allocation7 [shape = 's32[1]{0}', space=sflag, size = 0x4, scoped, tag = 'scoped memory for tpu_custom_call.1']
    #allocation8 [shape = 'u8[512]{0}', space=smem, size = 0x200, scoped, tag = 'output window, operand 0, single buffered']
    %7 = vsyncpa [#allocation4], 0
    %8 = vsyncpa [#allocation7], 0
    %9 = vsyncpa [#allocation5], 0
    // Predicated region
    $region2: #{tpu_custom_call.1} parent=1 // pred_check
      _
    $region3: #{tpu_custom_call.1} parent=1 // pred_check_branch
      %11 = sbr.rel (0) target = $region5
    $region4: #{tpu_custom_call.1} parent=1 // pred_region
      %s12 = sadd.s32 0, 0
      %s14 = ssub.s32 128, 128
      %15 = vsyncadd [#allocation4], %s14
      %s16 = smul.addr %s12, 128
      %s17 = scalar_lea.hbm %s0, %s16
      %s19 = sshll.u32 [#allocation3], 4
      %s20 = int_to_ptr.vmem [resolvable:$true] %s19
      %22 = dma.hbm_to_vmem [thread:$0]  %s17, 128, %s20, [#allocation4]
    $region5: #{tpu_custom_call.1} parent=1 // pred_fallthru
      _
    // Predicated region
    $region6: #{tpu_custom_call.1} parent=1 // pred_check
      _
    $region7: #{tpu_custom_call.1} parent=1 // pred_check_branch
      %24 = sbr.rel (0) target = $region9
    $region8: #{tpu_custom_call.1} parent=1 // pred_region
      %s25 = sadd.s32 0, 0
      %s27 = ssub.s32 128, 128
      %28 = vsyncadd [#allocation7], %s27
      %s29 = smul.addr %s25, 128
      %s30 = scalar_lea.hbm %s1, %s29
      %s32 = sshll.u32 [#allocation6], 4
      %s33 = int_to_ptr.vmem [resolvable:$true] %s32
      %35 = dma.hbm_to_vmem [thread:$0]  %s30, 128, %s33, [#allocation7]
    $region9: #{tpu_custom_call.1} parent=1 // pred_fallthru
      _
    // Predicated region
    $region10: #{tpu_custom_call.1} parent=1 // pred_check
      _
    $region11: #{tpu_custom_call.1} parent=1 // pred_check_branch
      %37 = sbr.rel (0) target = $region13
    $region12: #{tpu_custom_call.1} parent=1 // pred_region
      %38 = dma.done [#allocation4], 128
    $region13: #{tpu_custom_call.1} parent=1 // pred_fallthru
      _
    // Predicated region
    $region14: #{tpu_custom_call.1} parent=1 // pred_check
      _
    $region15: #{tpu_custom_call.1} parent=1 // pred_check_branch
      %40 = sbr.rel (0) target = $region17
    $region16: #{tpu_custom_call.1} parent=1 // pred_region
      %41 = dma.done [#allocation7], 128
    $region17: #{tpu_custom_call.1} parent=1 // pred_fallthru
      _
    %s42 = sadd.s32 0, 0
    %s43 = sadd.s32 0, 0
    %p44 = scmp.eq.s32.totalorder 0, 0
    // Predicated region
    $region18: #{tpu_custom_call.1} parent=1 // pred_check
      %p45 = pneg %p44
    $region19: #{tpu_custom_call.1} parent=1 // pred_check_branch
      %47 = sbr.rel (%p45) target = $region21
    $region20: #{tpu_custom_call.1} parent=1 // pred_region
      %48 = vst [vmem:[#allocation2] sm:$0xff] 0.0
    $region21: #{tpu_custom_call.1} parent=1 // pred_fallthru
      _
    %v49 = vld [vmem:[#allocation3] sm:$0xff]
    %v50 = vld [vmem:[#allocation6] sm:$0xff]
    %v51 = vmul.f32 %v50, 2.0
    %v52 = vmax.f32 %v51, -14.0
    %v53 = vmin.f32 %v52, 14.0
    %v54 = vmul.f32 %v49, %v49
    %v55 = vsub.f32 %v53, %v54
    %v56 = vmul.f32 %v53, 1.442695
    %v57 = vpow.pop %v56
    %v58 = vsub.f32 %v55, %v57
    %v59 = vld [vmem:[#allocation2] sm:$0xff]
    %v60 = vadd.f32 %v58, 0.0
    %v61 = vadd.f32 %v59, %v60
    %62 = vst [vmem:[#allocation2] sm:$0xff] %v61
    // Predicated region
    $region22: #{tpu_custom_call.1} parent=1 // pred_check
      %p63 = pneg %p44
    $region23: #{tpu_custom_call.1} parent=1 // pred_check_branch
      %65 = sbr.rel (%p63) target = $region25
    $region24: #{tpu_custom_call.1} parent=1 // pred_region
      %v66 = vld [vmem:[#allocation2] sm:$0xff]
      %67 = vadd.xlane.f32.xlu0 %v66
      %v68 = vpop.xlane.xlu0 %67
      %v69 = vrot.slane %v68, 4
      %v70 = vadd.f32 %v68, %v69
      %v71 = vrot.slane %v70, 2
      %v72 = vadd.f32 %v70, %v71
      %v73 = vrot.slane %v72, 1
      %v74 = vadd.f32 %v72, %v73
      %s75 = vtos %v74
      %s76 = scalar_lea.smem [#allocation8], 0
      %77 = sst [smem:[%s76]] %s75
    $region25: #{tpu_custom_call.1} parent=1 // pred_fallthru
      _
    // Predicated region
    $region26: #{tpu_custom_call.1} parent=1 // pred_check
      _
    $region27: #{tpu_custom_call.1} parent=1 // pred_check_branch
      %79 = sbr.rel (0) target = $region29
    $region28: #{tpu_custom_call.1} parent=1 // pred_region
      %s81 = ssub.s32 16, 16
      %82 = vsyncadd [#allocation5], %s81
      %85 = dma.smem_to_hbm [#allocation8], 16, %s2, [#allocation5]
    $region29: #{tpu_custom_call.1} parent=1 // pred_fallthru
      _
    // Predicated region
    $region30: #{tpu_custom_call.1} parent=1 // pred_check
      _
    $region31: #{tpu_custom_call.1} parent=1 // pred_check_branch
      %87 = sbr.rel (0) target = $region33
    $region32: #{tpu_custom_call.1} parent=1 // pred_region
      %88 = dma.done [#allocation5], 16
    $region33: #{tpu_custom_call.1} parent=1 // pred_fallthru
      _
    %89 = sfence
    %90 = vsyncpa [#allocation4], 1
    %91 = vsyncpa [#allocation7], 1
    %92 = vsyncpa [#allocation5], 1

</llo_original>
